<compile_context>
chip_gen: v7x
topology: tpu7x:2x2x1
jax: 0.10.0
libtpu: 0.0.40
codegen_flags: <defaults>
</compile_context>

<pallas_src>
import functools

import jax
import jax.numpy as jnp
from jax import lax
from jax.experimental import pallas as pl
from jax.experimental.pallas import tpu as pltpu


def _gelu_exact(x):
    # PyTorch nn.GELU() default is the exact erf formulation.
    return 0.5 * x * (1.0 + lax.erf(x * 0.7071067811865476))


def _round_up(x, m):
    return (x + m - 1) // m * m


def mlm_head_kernel(x_ref, w1_ref, b1_ref, gamma_ref, beta_ref,
                    w2_ref, b2_ref, out_ref, ln_scratch, *, eps):
    """Grid = (row tiles, vocab tiles); vocab axis is innermost/serial."""
    j = pl.program_id(1)

    @pl.when(j == 0)
    def _():
        # dense: (tm, H) @ (H, H) + (1, H), f32 accumulation on the MXU.
        h = jnp.dot(x_ref[...], w1_ref[...],
                    preferred_element_type=jnp.float32) + b1_ref[...]
        # GELU (exact, erf-based, matches nn.GELU() default).
        g = _gelu_exact(h)
        # LayerNorm over hidden (last) axis, biased variance, eps inside rsqrt.
        mean = jnp.mean(g, axis=-1, keepdims=True)
        centered = g - mean
        var = jnp.mean(centered * centered, axis=-1, keepdims=True)
        inv = lax.rsqrt(var + eps)
        ln = centered * inv * gamma_ref[...] + beta_ref[...]
        # Store in the dtype fed to the vocab matmul (avoids per-step casts).
        ln_scratch[...] = ln.astype(ln_scratch.dtype)

    # mlm_linear: (tm, H) @ (H, tv) + (1, tv); f32 accumulation + f32 bias add.
    out_ref[...] = (jnp.dot(ln_scratch[...], w2_ref[...],
                            preferred_element_type=jnp.float32)
                    + b2_ref[...]).astype(out_ref.dtype)


def masked_language_model(x, params, *, eps=1e-12, tm=256, tv=1024,
                          matmul_dtype=None):
    """x: (B, S, H). params = (w1_t(H,H), b1(H,), gamma(H,), beta(H,),
    w2_t(H,V), b2(V,)). Returns float32 logits (B, S, V).

    matmul_dtype: optional (e.g. jnp.bfloat16) dtype for the streamed vocab
    weight and the LN scratch operand; accumulation stays float32.
    """
    B, S, H = x.shape
    w1_t, b1, gamma, beta, w2_t, b2 = params
    V = w2_t.shape[1]
    N = B * S

    # Effective tiles: row tile multiple of 8 (sublane), vocab tile multiple
    # of 128 (lane); shrink to the (rounded-up) problem size when small.
    tm_eff = min(_round_up(tm, 8), _round_up(N, 8))
    tv_eff = min(_round_up(tv, 128), _round_up(V, 128))
    n_pad = _round_up(N, tm_eff)
    v_pad = _round_up(V, tv_eff)

    x2 = x.reshape(N, H).astype(jnp.float32)
    if n_pad != N:
        x2 = jnp.pad(x2, ((0, n_pad - N), (0, 0)))

    w2_use = w2_t
    b2_use = b2
    if v_pad != V:
        w2_use = jnp.pad(w2_use, ((0, 0), (0, v_pad - V)))
        b2_use = jnp.pad(b2_use, (0, v_pad - V))

    compute_dtype = jnp.float32 if matmul_dtype is None else matmul_dtype
    w2_use = w2_use.astype(compute_dtype)
    w1_use = w1_t.astype(jnp.float32)

    b1_2 = b1.reshape(1, H).astype(jnp.float32)
    gamma_2 = gamma.reshape(1, H).astype(jnp.float32)
    beta_2 = beta.reshape(1, H).astype(jnp.float32)
    b2_2 = b2_use.reshape(1, v_pad).astype(jnp.float32)

    grid = (n_pad // tm_eff, v_pad // tv_eff)

    kernel = functools.partial(mlm_head_kernel, eps=eps)

    w2_bytes = int(w2_use.size) * int(w2_use.dtype.itemsize)
    cost = pl.CostEstimate(
        flops=int(2 * n_pad * H * H + 2 * n_pad * H * v_pad),
        transcendentals=int(n_pad * H),
        bytes_accessed=int(x2.size * 4 + w1_use.size * 4
                           + grid[0] * w2_bytes      # W2 re-streamed per row tile
                           + b2_2.size * 4 + n_pad * v_pad * 4),
    )

    out = pl.pallas_call(
        kernel,
        out_shape=jax.ShapeDtypeStruct((n_pad, v_pad), jnp.float32),
        grid_spec=pltpu.PrefetchScalarGridSpec(
            num_scalar_prefetch=0,
            grid=grid,
            in_specs=[
                pl.BlockSpec((tm_eff, H), lambda i, j: (i, 0)),   # x rows
                pl.BlockSpec((H, H), lambda i, j: (0, 0)),        # dense weight
                pl.BlockSpec((1, H), lambda i, j: (0, 0)),        # dense bias
                pl.BlockSpec((1, H), lambda i, j: (0, 0)),        # LN gamma
                pl.BlockSpec((1, H), lambda i, j: (0, 0)),        # LN beta
                pl.BlockSpec((H, tv_eff), lambda i, j: (0, j)),   # vocab W tile
                pl.BlockSpec((1, tv_eff), lambda i, j: (0, j)),   # vocab bias
            ],
            out_specs=pl.BlockSpec((tm_eff, tv_eff), lambda i, j: (i, j)),
            scratch_shapes=[pltpu.VMEM((tm_eff, H), compute_dtype)],
        ),
        compiler_params=pltpu.CompilerParams(
            # Vocab axis MUST stay serial ("arbitrary") for the j==0 scratch
            # reuse; row axis is safe to shard across cores.
            dimension_semantics=("parallel", "arbitrary"),
            vmem_limit_bytes=48 * 1024 * 1024,
        ),
        cost_estimate=cost,
    )(x2, w1_use, b1_2, gamma_2, beta_2, w2_use, b2_2)

    return out[:N, :V].reshape(B, S, V)


def reference(x, params, eps=1e-12):
    w1_t, b1, gamma, beta, w2_t, b2 = params
    h = x @ w1_t + b1
    g = _gelu_exact(h)
    mean = jnp.mean(g, axis=-1, keepdims=True)
    var = jnp.mean((g - mean) ** 2, axis=-1, keepdims=True)
    ln = (g - mean) * lax.rsqrt(var + eps) * gamma + beta
    return ln @ w2_t + b2


def _make_params(key, H, V):
    kw1, kb1, kg, kbt, kw2 = jax.random.split(key, 5)
    w1 = jax.random.normal(kw1, (H, H), dtype=jnp.float32) * 0.05
    b1 = jax.random.normal(kb1, (H,), dtype=jnp.float32) * 0.05
    gamma = 1.0 + 0.1 * jax.random.normal(kg, (H,), dtype=jnp.float32)
    beta = 0.1 * jax.random.normal(kbt, (H,), dtype=jnp.float32)
    w2 = jax.random.normal(kw2, (V, H), dtype=jnp.float32) * 0.05  # (out,in)
    b2 = jnp.zeros((V,), dtype=jnp.float32)   # self.bias initialized to zeros
    return (w1.T, b1, gamma, beta, w2.T, b2)


if __name__ == "__main__":
    eps = 1e-12
    key = jax.random.PRNGKey(0)
    k1, k2, k3 = jax.random.split(key, 3)

    # Case 1: hidden=32, vocab=256, batch=2, seq=8 — default (large) tiles.
    B, S, H, V = 2, 8, 32, 256
    x = jax.random.normal(k1, (B, S, H), dtype=jnp.float32)
    params = _make_params(k2, H, V)

    out = jax.block_until_ready(masked_language_model(x, params, eps=eps))
    ref = reference(x, params, eps=eps)
    assert out.shape == (B, S, V)
    assert jnp.allclose(out, ref, atol=1e-4, rtol=1e-4), "mismatch (default tiles)"

    # Case 2: same data, small tiles -> multi-step grid exercises the
    # j==0 scratch-reuse path across row and vocab tiles.
    out2 = jax.block_until_ready(
        masked_language_model(x, params, eps=eps, tm=8, tv=128))
    assert jnp.allclose(out2, ref, atol=1e-4, rtol=1e-4), "mismatch (small tiles)"

    # Case 3: non-aligned N and V -> exercises row/vocab zero-padding path.
    B3, S3, H3, V3 = 2, 9, 32, 250
    x3 = jax.random.normal(k3, (B3, S3, H3), dtype=jnp.float32)
    params3 = _make_params(jax.random.PRNGKey(7), H3, V3)
    out3 = jax.block_until_ready(
        masked_language_model(x3, params3, eps=eps, tm=8, tv=128))
    ref3 = reference(x3, params3, eps=eps)
    assert out3.shape == (B3, S3, V3)
    assert jnp.allclose(out3, ref3, atol=1e-4, rtol=1e-4), "mismatch (padded)"

    # Case 4: bf16 vocab-projection weight + scratch (f32 accumulation),
    # looser tolerance as logits deviate slightly from the f32 reference.
    out4 = jax.block_until_ready(
        masked_language_model(x, params, eps=eps, matmul_dtype=jnp.bfloat16))
    assert jnp.allclose(out4, ref, atol=5e-2, rtol=5e-2), "mismatch (bf16 path)"

    print("KERNEL_OK")
</pallas_src>

<mosaic_0001>
module attributes {stable_mosaic.version = 11 : i64} {
  func.func @mlm_head_kernel(%arg0: i32, %arg1: i32, %arg2: memref<16x32xf32, #tpu.memory_space<vmem>>, %arg3: memref<32x32xf32, #tpu.memory_space<vmem>>, %arg4: memref<1x32xf32, #tpu.memory_space<vmem>>, %arg5: memref<1x32xf32, #tpu.memory_space<vmem>>, %arg6: memref<1x32xf32, #tpu.memory_space<vmem>>, %arg7: memref<32x256xf32, #tpu.memory_space<vmem>>, %arg8: memref<1x256xf32, #tpu.memory_space<vmem>>, %arg9: memref<16x256xf32, #tpu.memory_space<vmem>>, %arg10: memref<16x32xf32, #tpu.memory_space<vmem>>) attributes {dimension_semantics = [#tpu.dimension_semantics<parallel>, #tpu.dimension_semantics<arbitrary>], iteration_bounds = array<i64: 1, 1>, scalar_prefetch = 0 : i64, scratch_operands = 1 : i64, tpu.core_type = #tpu.core_type<tc>, window_params = [{transform_indices = @transform_0, window_bounds = array<i64: 16, 32>}, {pipeline_mode = #tpu.pipeline_mode<synchronous>, transform_indices = @transform_1, window_bounds = array<i64: 32, 32>}, {pipeline_mode = #tpu.pipeline_mode<synchronous>, transform_indices = @transform_2, window_bounds = array<i64: 1, 32>}, {pipeline_mode = #tpu.pipeline_mode<synchronous>, transform_indices = @transform_3, window_bounds = array<i64: 1, 32>}, {pipeline_mode = #tpu.pipeline_mode<synchronous>, transform_indices = @transform_4, window_bounds = array<i64: 1, 32>}, {transform_indices = @transform_5, window_bounds = array<i64: 32, 256>}, {transform_indices = @transform_6, window_bounds = array<i64: 1, 256>}, {transform_indices = @transform_7, window_bounds = array<i64: 16, 256>}]} {
    %c0_i32 = arith.constant 0 : i32
    %0 = arith.cmpi eq, %arg1, %c0_i32 : i32
    %1 = arith.extui %0 : i1 to i32
    %c0_i32_0 = arith.constant 0 : i32
    %2 = arith.cmpi ne, %1, %c0_i32_0 : i32
    scf.if %2 {
      %c0_8 = arith.constant 0 : index
      %c0_9 = arith.constant 0 : index
      %10 = vector.load %arg2[%c0_8, %c0_9] : memref<16x32xf32, #tpu.memory_space<vmem>>, vector<16x32xf32>
      %c0_10 = arith.constant 0 : index
      %c0_11 = arith.constant 0 : index
      %11 = vector.load %arg3[%c0_10, %c0_11] : memref<32x32xf32, #tpu.memory_space<vmem>>, vector<32x32xf32>
      %cst_12 = arith.constant dense<0.000000e+00> : vector<16x32xf32>
      %12 = tpu.matmul %10, %11, %cst_12 {dimension_numbers = #tpu.dot_dimension_numbers<[1], [0], [0], [1], [0, 0, 1, 1], [], []>} : vector<16x32xf32>, vector<32x32xf32>, vector<16x32xf32> -> vector<16x32xf32>
      %c0_13 = arith.constant 0 : index
      %c0_14 = arith.constant 0 : index
      %13 = vector.load %arg4[%c0_13, %c0_14] : memref<1x32xf32, #tpu.memory_space<vmem>>, vector<1x32xf32>
      %14 = vector.broadcast %13 : vector<1x32xf32> to vector<16x32xf32>
      %15 = arith.addf %12, %14 : vector<16x32xf32>
      %cst_15 = arith.constant 5.000000e-01 : f32
      %16 = vector.broadcast %cst_15 : f32 to vector<16x32xf32>
      %17 = arith.mulf %16, %15 : vector<16x32xf32>
      %cst_16 = arith.constant 0.707106769 : f32
      %18 = vector.broadcast %cst_16 : f32 to vector<16x32xf32>
      %19 = arith.mulf %15, %18 : vector<16x32xf32>
      %20 = math.erf %19 : vector<16x32xf32>
      %cst_17 = arith.constant 1.000000e+00 : f32
      %21 = vector.broadcast %cst_17 : f32 to vector<16x32xf32>
      %22 = arith.addf %21, %20 : vector<16x32xf32>
      %23 = arith.mulf %17, %22 : vector<16x32xf32>
      %cst_18 = arith.constant dense<0.000000e+00> : vector<16xf32>
      %24 = vector.multi_reduction <add>, %23, %cst_18 [1] : vector<16x32xf32> to vector<16xf32>
      %25 = vector.shape_cast %24 : vector<16xf32> to vector<16x1xf32>
      %cst_19 = arith.constant 3.200000e+01 : f32
      %26 = vector.broadcast %cst_19 : f32 to vector<16x1xf32>
      %27 = arith.divf %25, %26 : vector<16x1xf32>
      %28 = vector.broadcast %27 : vector<16x1xf32> to vector<16x32xf32>
      %29 = arith.subf %23, %28 : vector<16x32xf32>
      %30 = arith.mulf %29, %29 : vector<16x32xf32>
      %cst_20 = arith.constant dense<0.000000e+00> : vector<16xf32>
      %31 = vector.multi_reduction <add>, %30, %cst_20 [1] : vector<16x32xf32> to vector<16xf32>
      %32 = vector.shape_cast %31 : vector<16xf32> to vector<16x1xf32>
      %cst_21 = arith.constant 3.200000e+01 : f32
      %33 = vector.broadcast %cst_21 : f32 to vector<16x1xf32>
      %34 = arith.divf %32, %33 : vector<16x1xf32>
      %cst_22 = arith.constant 9.99999996E-13 : f32
      %35 = vector.broadcast %cst_22 : f32 to vector<16x1xf32>
      %36 = arith.addf %34, %35 : vector<16x1xf32>
      %37 = math.rsqrt %36 : vector<16x1xf32>
      %38 = vector.broadcast %37 : vector<16x1xf32> to vector<16x32xf32>
      %39 = arith.mulf %29, %38 : vector<16x32xf32>
      %c0_23 = arith.constant 0 : index
      %c0_24 = arith.constant 0 : index
      %40 = vector.load %arg5[%c0_23, %c0_24] : memref<1x32xf32, #tpu.memory_space<vmem>>, vector<1x32xf32>
      %41 = vector.broadcast %40 : vector<1x32xf32> to vector<16x32xf32>
      %42 = arith.mulf %39, %41 : vector<16x32xf32>
      %c0_25 = arith.constant 0 : index
      %c0_26 = arith.constant 0 : index
      %43 = vector.load %arg6[%c0_25, %c0_26] : memref<1x32xf32, #tpu.memory_space<vmem>>, vector<1x32xf32>
      %44 = vector.broadcast %43 : vector<1x32xf32> to vector<16x32xf32>
      %45 = arith.addf %42, %44 : vector<16x32xf32>
      %c0_27 = arith.constant 0 : index
      %c0_28 = arith.constant 0 : index
      %46 = vector.load %arg10[%c0_27, %c0_28] : memref<16x32xf32, #tpu.memory_space<vmem>>, vector<16x32xf32>
      tpu.vector_store %arg10[%c0_27, %c0_28], %45 {strides = array<i32>} : memref<16x32xf32, #tpu.memory_space<vmem>>, vector<16x32xf32>,
    } else {
    }
    %c0 = arith.constant 0 : index
    %c0_1 = arith.constant 0 : index
    %3 = vector.load %arg10[%c0, %c0_1] : memref<16x32xf32, #tpu.memory_space<vmem>>, vector<16x32xf32>
    %c0_2 = arith.constant 0 : index
    %c0_3 = arith.constant 0 : index
    %4 = vector.load %arg7[%c0_2, %c0_3] : memref<32x256xf32, #tpu.memory_space<vmem>>, vector<32x256xf32>
    %cst = arith.constant dense<0.000000e+00> : vector<16x256xf32>
    %5 = tpu.matmul %3, %4, %cst {dimension_numbers = #tpu.dot_dimension_numbers<[1], [0], [0], [1], [0, 0, 1, 1], [], []>} : vector<16x32xf32>, vector<32x256xf32>, vector<16x256xf32> -> vector<16x256xf32>
    %c0_4 = arith.constant 0 : index
    %c0_5 = arith.constant 0 : index
    %6 = vector.load %arg8[%c0_4, %c0_5] : memref<1x256xf32, #tpu.memory_space<vmem>>, vector<1x256xf32>
    %7 = vector.broadcast %6 : vector<1x256xf32> to vector<16x256xf32>
    %8 = arith.addf %5, %7 : vector<16x256xf32>
    %c0_6 = arith.constant 0 : index
    %c0_7 = arith.constant 0 : index
    %9 = vector.load %arg9[%c0_6, %c0_7] : memref<16x256xf32, #tpu.memory_space<vmem>>, vector<16x256xf32>
    tpu.vector_store %arg9[%c0_6, %c0_7], %8 {strides = array<i32>} : memref<16x256xf32, #tpu.memory_space<vmem>>, vector<16x256xf32>,
    return
  }
  func.func @transform_0(%arg0: i32, %arg1: i32) -> (i32, i32) {
    %c0_i32 = arith.constant 0 : i32
    %c0_i32_0 = arith.constant 0 : i32
    return %arg0, %c0_i32 : i32, i32
  }
  func.func @transform_1(%arg0: i32, %arg1: i32) -> (i32, i32) {
    %c0_i32 = arith.constant 0 : i32
    %c0_i32_0 = arith.constant 0 : i32
    %c0_i32_1 = arith.constant 0 : i32
    return %c0_i32, %c0_i32_0 : i32, i32
  }
  func.func @transform_2(%arg0: i32, %arg1: i32) -> (i32, i32) {
    %c0_i32 = arith.constant 0 : i32
    %c0_i32_0 = arith.constant 0 : i32
    %c0_i32_1 = arith.constant 0 : i32
    return %c0_i32, %c0_i32_0 : i32, i32
  }
  func.func @transform_3(%arg0: i32, %arg1: i32) -> (i32, i32) {
    %c0_i32 = arith.constant 0 : i32
    %c0_i32_0 = arith.constant 0 : i32
    %c0_i32_1 = arith.constant 0 : i32
    return %c0_i32, %c0_i32_0 : i32, i32
  }
  func.func @transform_4(%arg0: i32, %arg1: i32) -> (i32, i32) {
    %c0_i32 = arith.constant 0 : i32
    %c0_i32_0 = arith.constant 0 : i32
    %c0_i32_1 = arith.constant 0 : i32
    return %c0_i32, %c0_i32_0 : i32, i32
  }
  func.func @transform_5(%arg0: i32, %arg1: i32) -> (i32, i32) {
    %c0_i32 = arith.constant 0 : i32
    %c0_i32_0 = arith.constant 0 : i32
    return %c0_i32, %arg1 : i32, i32
  }
  func.func @transform_6(%arg0: i32, %arg1: i32) -> (i32, i32) {
    %c0_i32 = arith.constant 0 : i32
    %c0_i32_0 = arith.constant 0 : i32
    return %c0_i32, %arg1 : i32, i32
  }
  func.func @transform_7(%arg0: i32, %arg1: i32) -> (i32, i32) {
    %c0_i32 = arith.constant 0 : i32
    return %arg0, %arg1 : i32, i32
  }
}

</mosaic_0001>

<llo_original>
// kernel: tpu_custom_call.1
$region0: #{tpu_custom_call.1}
  #allocation0 [shape = 'u32[]', space=smem, size = 0x4, offset = 0x4, fixed_abs, tag = 'smem constant byte address 0x4 - core index']
  #allocation1 [shape = 'u32[144,128]{1,0:T(1,128)}', space=vmem, size = 0x12000, scoped, tag = 'internal scratch']
  #allocation2 [shape = 'f32[16,32]{1,0:T(8,128)}', space=vmem, size = 0x2000, scoped, tag = 'scratch operand']
  %s0 = inlined_call_operand.hbm [shape: f32[16,32], index: 0, kind: input, shape index: {}]
  %s1 = inlined_call_operand.hbm [shape: f32[32,32], index: 1, kind: input, shape index: {}]
  %s2 = inlined_call_operand.vmem [shape: f32[1,32], index: 2, kind: input, shape index: {}]
  %s3 = inlined_call_operand.vmem [shape: f32[1,32], index: 3, kind: input, shape index: {}]
  %s4 = inlined_call_operand.vmem [shape: f32[1,32], index: 4, kind: input, shape index: {}]
  %s5 = inlined_call_operand.hbm [shape: f32[32,256], index: 5, kind: input, shape index: {}]
  %s6 = inlined_call_operand.vmem [shape: f32[1,256], index: 6, kind: input, shape index: {}]
  %s7 = inlined_call_operand.hbm [shape: f32[16,256], index: 7, kind: output, shape index: {}]
  %s8 = sld [smem:[#allocation0]]
  $region54: #{tpu_custom_call.1} parent=0
    _
  %s10 = ssub.s32 1, %s8
  %s11 = scalar_select 0, %s10, %s8
  $region1: #{tpu_custom_call.1} parent=0
    #allocation3 [shape = 'u8[8192]{0}', space=vmem, size = 0x2000, scoped, tag = 'input window, operand 0, single buffered']
    #allocation4 [shape = 's32[1]{0}', space=sflag, size = 0x4, scoped, tag = 'scoped memory for tpu_custom_call.1']
    #allocation5 [shape = 's32[1]{0}', space=sflag, size = 0x4, scoped, tag = 'scoped memory for tpu_custom_call.1']
    #allocation6 [shape = 'u8[16384]{0}', space=vmem, size = 0x4000, scoped, tag = 'input window, operand 1, single buffered']
    #allocation7 [shape = 's32[1]{0}', space=sflag, size = 0x4, scoped, tag = 'scoped memory for tpu_custom_call.1']
    #allocation8 [shape = 'u8[32768]{0}', space=vmem, size = 0x8000, scoped, tag = 'input window, operand 5, single buffered']
    #allocation9 [shape = 'u8[16384]{0}', space=vmem, size = 0x4000, scoped, tag = 'output window, operand 0, single buffered']
    %12 = vsyncpa [#allocation4], 0
    %13 = vsyncpa [#allocation7], 0
    %14 = vsyncpa [#allocation5], 0
    // Predicated region
    $region2: #{tpu_custom_call.1} parent=1 // pred_check
      _
    $region3: #{tpu_custom_call.1} parent=1 // pred_check_branch
      %16 = sbr.rel (0) target = $region5
    $region4: #{tpu_custom_call.1} parent=1 // pred_region
      %s18 = ssub.s32 256, 256
      %19 = vsyncadd [#allocation4], %s18
      %s20 = sshll.u32 [#allocation3], 4
      %s21 = int_to_ptr.vmem [resolvable:$true] %s20
      %26 = dma.hbm_to_vmem [thread:$0]  %s0, 256, %s21, [#allocation4], 128, 128, 8
    $region5: #{tpu_custom_call.1} parent=1 // pred_fallthru
      _
    // Predicated region
    $region6: #{tpu_custom_call.1} parent=1 // pred_check
      _
    $region7: #{tpu_custom_call.1} parent=1 // pred_check_branch
      %28 = sbr.rel (0) target = $region9
    $region8: #{tpu_custom_call.1} parent=1 // pred_region
      %s30 = ssub.s32 512, 512
      %31 = vsyncadd [#allocation7], %s30
      %s32 = sshll.u32 [#allocation6], 4
      %s33 = int_to_ptr.vmem [resolvable:$true] %s32
      %38 = dma.hbm_to_vmem [thread:$0]  %s1, 512, %s33, [#allocation7], 128, 128, 8
    $region9: #{tpu_custom_call.1} parent=1 // pred_fallthru
      _
    // Predicated region
    $region10: #{tpu_custom_call.1} parent=1 // pred_check
      _
    $region11: #{tpu_custom_call.1} parent=1 // pred_check_branch
      %40 = sbr.rel (0) target = $region13
    $region12: #{tpu_custom_call.1} parent=1 // pred_region
      _
    $region13: #{tpu_custom_call.1} parent=1 // pred_fallthru
      _
    // Predicated region
    $region14: #{tpu_custom_call.1} parent=1 // pred_check
      _
    $region15: #{tpu_custom_call.1} parent=1 // pred_check_branch
      %42 = sbr.rel (0) target = $region17
    $region16: #{tpu_custom_call.1} parent=1 // pred_region
      _
    $region17: #{tpu_custom_call.1} parent=1 // pred_fallthru
      _
    // Predicated region
    $region18: #{tpu_custom_call.1} parent=1 // pred_check
      _
    $region19: #{tpu_custom_call.1} parent=1 // pred_check_branch
      %44 = sbr.rel (0) target = $region21
    $region20: #{tpu_custom_call.1} parent=1 // pred_region
      _
    $region21: #{tpu_custom_call.1} parent=1 // pred_fallthru
      _
    // Predicated region
    $region22: #{tpu_custom_call.1} parent=1 // pred_check
      _
    $region23: #{tpu_custom_call.1} parent=1 // pred_check_branch
      %46 = sbr.rel (0) target = $region25
    $region24: #{tpu_custom_call.1} parent=1 // pred_region
      %s48 = ssub.s32 1024, 1024
      %49 = vsyncadd [#allocation7], %s48
      %s50 = sshll.u32 [#allocation8], 4
      %s51 = int_to_ptr.vmem [resolvable:$true] %s50
      %56 = dma.hbm_to_vmem [thread:$0]  %s5, 1024, %s51, [#allocation7], 256, 256, 16
    $region25: #{tpu_custom_call.1} parent=1 // pred_fallthru
      _
    // Predicated region
    $region26: #{tpu_custom_call.1} parent=1 // pred_check
      _
    $region27: #{tpu_custom_call.1} parent=1 // pred_check_branch
      %58 = sbr.rel (0) target = $region29
    $region28: #{tpu_custom_call.1} parent=1 // pred_region
      _
    $region29: #{tpu_custom_call.1} parent=1 // pred_fallthru
      _
    // Predicated region
    $region30: #{tpu_custom_call.1} parent=1 // pred_check
      _
    $region31: #{tpu_custom_call.1} parent=1 // pred_check_branch
      %60 = sbr.rel (0) target = $region33
    $region32: #{tpu_custom_call.1} parent=1 // pred_region
      %61 = dma.done [#allocation4], 256
    $region33: #{tpu_custom_call.1} parent=1 // pred_fallthru
      _
    // Predicated region
    $region34: #{tpu_custom_call.1} parent=1 // pred_check
      _
    $region35: #{tpu_custom_call.1} parent=1 // pred_check_branch
      %63 = sbr.rel (0) target = $region37
    $region36: #{tpu_custom_call.1} parent=1 // pred_region
      %64 = dma.done [#allocation7], 512
    $region37: #{tpu_custom_call.1} parent=1 // pred_fallthru
      _
    // Predicated region
    $region38: #{tpu_custom_call.1} parent=1 // pred_check
      _
    $region39: #{tpu_custom_call.1} parent=1 // pred_check_branch
      %66 = sbr.rel (0) target = $region41
    $region40: #{tpu_custom_call.1} parent=1 // pred_region
      %67 = dma.done [#allocation7], 1024
    $region41: #{tpu_custom_call.1} parent=1 // pred_fallthru
      _
    %p68 = scmp.eq.s32.totalorder 0, 0
    // Predicated region
    $region42: #{tpu_custom_call.1} parent=1 // pred_check
      %p69 = pneg %p68
    $region43: #{tpu_custom_call.1} parent=1 // pred_check_branch
      %71 = sbr.rel (%p69) target = $region45
    $region44: #{tpu_custom_call.1} parent=1 // pred_region
      %v72 = vld [vmem:[#allocation3] sm:$0xff]
      %v73 = vld [vmem:[#allocation3 + $0x8] sm:$0xff]
      %v74 = vld [vmem:[#allocation6] sm:$0xff]
      %v75 = vld [vmem:[#allocation6 + $0x8] sm:$0xff]
      %v76 = vld [vmem:[#allocation6 + $0x10] sm:$0xff]
      %v77 = vld [vmem:[#allocation6 + $0x18] sm:$0xff]
      %v78 = vld [vmem:[%s2] sm:$0x1]
      %v80 = vlaneseq
      %v81 = vshrl.u32 %v80, 7
      %v82 = vsub.s32 0, %v81
      %v83 = vrot.slane %v78, %v82
      %vm85 = vcmask 261120
      %v87 = vsel %vm85, %v72, 0
      %v90 = vsel %vm85, %v73, 0
      %92 = vmatprep.subr.mxu0 0.0
      %93 = vmatpush1.msra.mxu0 %v74
      %94 = vmatprep.subr.mxu0 0.0
      %95 = vmatpush1.msra.mxu0 %v75
      %96 = vmatprep.subr.mxu0 0.0
      %97 = vmatpush1.msra.mxu0 %v76
      %98 = vmatprep.subr.mxu0 0.0
      %99 = vmatpush1.msra.mxu0 %v77
      %100 = vmatprep.subr.mxu0 0.0
      %101 = vmatpush1.msra.mxu0 0.0
      %102 = vmatprep.subr.mxu0 0.0
      %103 = vmatpush1.msra.mxu0 0.0
      %104 = vmatprep.subr.mxu0 0.0
      %105 = vmatpush1.msra.mxu0 0.0
      %106 = vmatprep.subr.mxu0 0.0
      %107 = vmatpush1.msra.mxu0 0.0
      %108 = vmatprep.subr.mxu0 0.0
      %109 = vmatpush1.msra.mxu0 0.0
      %110 = vmatprep.subr.mxu0 0.0
      %111 = vmatpush1.msra.mxu0 0.0
      %112 = vmatprep.subr.mxu0 0.0
      %113 = vmatpush1.msra.mxu0 0.0
      %114 = vmatprep.subr.mxu0 0.0
      %115 = vmatpush1.msra.mxu0 0.0
      %116 = vmatprep.subr.mxu0 0.0
      %117 = vmatpush1.msra.mxu0 0.0
      %118 = vmatprep.subr.mxu0 0.0
      %119 = vmatpush1.msra.mxu0 0.0
      %120 = vmatprep.subr.mxu0 0.0
      %121 = vmatpush1.msra.mxu0 0.0
      %122 = vmatprep.subr.mxu0 0.0
      %123 = vmatpush1.msra.mxu0 0.0
      %124 = vmatprep.subr.mxu0 0.0
      %125 = vmatpush1.msra.mxu0 0.0
      %126 = vmatprep.subr.mxu0 0.0
      %127 = vmatpush1.msra.mxu0 0.0
      %128 = vmatprep.subr.mxu0 0.0
      %129 = vmatpush1.msra.mxu0 0.0
      %130 = vmatprep.subr.mxu0 0.0
      %131 = vmatpush1.msra.mxu0 0.0
      %132 = vmatprep.subr.mxu0 0.0
      %133 = vmatpush1.msra.mxu0 0.0
      %134 = vmatprep.subr.mxu0 0.0
      %135 = vmatpush1.msra.mxu0 0.0
      %136 = vmatprep.subr.mxu0 0.0
      %137 = vmatpush1.msra.mxu0 0.0
      %138 = vmatprep.subr.mxu0 0.0
      %139 = vmatpush1.msra.mxu0 0.0
      %140 = vmatprep.subr.mxu0 0.0
      %141 = vmatpush1.msra.mxu0 0.0
      %142 = vmatprep.subr.mxu0 0.0
      %143 = vmatpush1.msra.mxu0 0.0
      %144 = vmatprep.subr.mxu0 0.0
      %145 = vmatpush1.msra.mxu0 0.0
      %146 = vmatprep.subr.mxu0 0.0
      %147 = vmatpush1.msra.mxu0 0.0
      %148 = vmatprep.subr.mxu0 0.0
      %149 = vmatpush1.msra.mxu0 0.0
      %150 = vmatprep.subr.mxu0 0.0
      %151 = vmatpush1.msra.mxu0 0.0
      %152 = vmatprep.subr.mxu0 0.0
      %153 = vmatpush1.msra.mxu0 0.0
      %154 = vmatprep.subr.mxu0 0.0
      %155 = vmatpush1.msra.mxu0 0.0
      %156 = vmatprep.mubr.f32.mxu0 0.0
      %157 = vmatmul.mubr.f32.gmra.mrb[0].mxu0 %v87
      %v158 = vpop.f32.mrb[0].mxu0
      %v159 = vadd.f32 %v83, %v158
      %v160 = vpop.f32.mrb[0].mxu0
      %161 = vmatprep.mubr.f32.mxu0 0.0
      %162 = vmatmul.mubr.f32.gmra.mrb[0].mxu0 %v90
      %v163 = vpop.f32.mrb[0].mxu0
      %v164 = vadd.f32 %v83, %v163
      %v165 = vpop.f32.mrb[0].mxu0
      %166 = vdwg.mxu0
      %v167 = vmul.f32 %v159, 0.5
      %v168 = vmul.f32 %v164, 0.5
      %v169 = vmul.f32 %v159, 0.70710677
      %v170 = vmul.f32 %v164, 0.70710677
      %v171 = verf.f32.pop %v169
      %v172 = verf.f32.pop %v170
      %v173 = vadd.f32 %v171, 1.0
      %v174 = vadd.f32 %v172, 1.0
      %v175 = vmul.f32 %v167, %v173
      %v176 = vmul.f32 %v168, %v174
      %v177 = vsel %vm85, %v175, 0.0
      %178 = vadd.xlane.f32.xlu0 %v177
      %v179 = vpop.xlane.xlu0 %178
      %v180 = vsel %vm85, %v176, 0.0
      %181 = vadd.xlane.f32.xlu0 %v180
      %v182 = vpop.xlane.xlu0 %181
      %v183 = vrcp.pop 32.0
      %v184 = vmul.f32 %v179, %v183
      %v185 = vmul.f32 %v182, %v183
      %v186 = vsub.f32 %v175, %v184
      %v187 = vsub.f32 %v176, %v185
      %v188 = vmul.f32 %v186, %v186
      %v189 = vmul.f32 %v187, %v187
      %v190 = vsel %vm85, %v188, 0.0
      %191 = vadd.xlane.f32.xlu0 %v190
      %v192 = vpop.xlane.xlu0 %191
      %v193 = vsel %vm85, %v189, 0.0
      %194 = vadd.xlane.f32.xlu0 %v193
      %v195 = vpop.xlane.xlu0 %194
      %v196 = vmul.f32 %v192, %v183
      %v197 = vmul.f32 %v195, %v183
      %v198 = vadd.f32 %v196, 1e-12
      %v199 = vadd.f32 %v197, 1e-12
      %v200 = vrsqrt.pop %v198
      %v201 = vrsqrt.pop %v199
      %v202 = vmul.f32 %v186, %v200
      %v203 = vmul.f32 %v187, %v201
      %v204 = vld [vmem:[%s3] sm:$0x1]
      %v206 = vlaneseq
      %v207 = vshrl.u32 %v206, 7
      %v208 = vsub.s32 0, %v207
      %v209 = vrot.slane %v204, %v208
      %v211 = vmul.f32 %v202, %v209
      %v212 = vmul.f32 %v203, %v209
      %v213 = vld [vmem:[%s4] sm:$0x1]
      %v215 = vlaneseq
      %v216 = vshrl.u32 %v215, 7
      %v217 = vsub.s32 0, %v216
      %v218 = vrot.slane %v213, %v217
      %v220 = vadd.f32 %v211, %v218
      %v221 = vadd.f32 %v212, %v218
      %222 = vst.msk [vmem:[#allocation2] sm:$0xff] %vm85, %v220
      %223 = vst.msk [vmem:[#allocation2 + $0x8] sm:$0xff] %vm85, %v221
    $region45: #{tpu_custom_call.1} parent=1 // pred_fallthru
      _
    %v224 = vld [vmem:[#allocation2] sm:$0xff]
    %v225 = vld [vmem:[#allocation2 + $0x8] sm:$0xff]
    %v226 = vld [vmem:[#allocation8] sm:$0xff]
    %v227 = vld [vmem:[#allocation8 + $0x8] sm:$0xff]
    %v228 = vld [vmem:[#allocation8 + $0x10] sm:$0xff]
    %v229 = vld [vmem:[#allocation8 + $0x18] sm:$0xff]
    %v230 = vld [vmem:[#allocation8 + $0x20] sm:$0xff]
    %v231 = vld [vmem:[#allocation8 + $0x28] sm:$0xff]
    %v232 = vld [vmem:[#allocation8 + $0x30] sm:$0xff]
    %v233 = vld [vmem:[#allocation8 + $0x38] sm:$0xff]
    %v234 = vld [vmem:[%s6] sm:$0x3]
    %v236 = vlaneseq
    %v237 = vshrl.u32 %v236, 7
    %v238 = vsub.s32 0, %v237
    %v239 = vrot.slane %v234, %v238
    %v240 = vlaneseq
    %v241 = vshrl.u32 %v240, 7
    %v242 = vsub.s32 1, %v241
    %v243 = vrot.slane %v234, %v242
    %vm246 = vcmask 261120
    %v248 = vsel %vm246, %v224, 0
    %v251 = vsel %vm246, %v225, 0
    %253 = vmatprep.subr.mxu0 %v227
    %254 = vmatpush1.msra.mxu0 %v226
    %255 = vmatprep.subr.mxu0 %v229
    %256 = vmatpush1.msra.mxu0 %v228
    %257 = vmatprep.subr.mxu0 %v231
    %258 = vmatpush1.msra.mxu0 %v230
    %259 = vmatprep.subr.mxu0 %v233
    %260 = vmatpush1.msra.mxu0 %v232
    %261 = vmatprep.subr.mxu0 0.0
    %262 = vmatpush1.msra.mxu0 0.0
    %263 = vmatprep.subr.mxu0 0.0
    %264 = vmatpush1.msra.mxu0 0.0
    %265 = vmatprep.subr.mxu0 0.0
    %266 = vmatpush1.msra.mxu0 0.0
    %267 = vmatprep.subr.mxu0 0.0
    %268 = vmatpush1.msra.mxu0 0.0
    %269 = vmatprep.subr.mxu0 0.0
    %270 = vmatpush1.msra.mxu0 0.0
    %271 = vmatprep.subr.mxu0 0.0
    %272 = vmatpush1.msra.mxu0 0.0
    %273 = vmatprep.subr.mxu0 0.0
    %274 = vmatpush1.msra.mxu0 0.0
    %275 = vmatprep.subr.mxu0 0.0
    %276 = vmatpush1.msra.mxu0 0.0
    %277 = vmatprep.subr.mxu0 0.0
    %278 = vmatpush1.msra.mxu0 0.0
    %279 = vmatprep.subr.mxu0 0.0
    %280 = vmatpush1.msra.mxu0 0.0
    %281 = vmatprep.subr.mxu0 0.0
    %282 = vmatpush1.msra.mxu0 0.0
    %283 = vmatprep.subr.mxu0 0.0
    %284 = vmatpush1.msra.mxu0 0.0
    %285 = vmatprep.subr.mxu0 0.0
    %286 = vmatpush1.msra.mxu0 0.0
    %287 = vmatprep.subr.mxu0 0.0
    %288 = vmatpush1.msra.mxu0 0.0
    %289 = vmatprep.subr.mxu0 0.0
    %290 = vmatpush1.msra.mxu0 0.0
    %291 = vmatprep.subr.mxu0 0.0
    %292 = vmatpush1.msra.mxu0 0.0
    %293 = vmatprep.subr.mxu0 0.0
    %294 = vmatpush1.msra.mxu0 0.0
    %295 = vmatprep.subr.mxu0 0.0
    %296 = vmatpush1.msra.mxu0 0.0
    %297 = vmatprep.subr.mxu0 0.0
    %298 = vmatpush1.msra.mxu0 0.0
    %299 = vmatprep.subr.mxu0 0.0
    %300 = vmatpush1.msra.mxu0 0.0
    %301 = vmatprep.subr.mxu0 0.0
    %302 = vmatpush1.msra.mxu0 0.0
    %303 = vmatprep.subr.mxu0 0.0
    %304 = vmatpush1.msra.mxu0 0.0
    %305 = vmatprep.subr.mxu0 0.0
    %306 = vmatpush1.msra.mxu0 0.0
    %307 = vmatprep.subr.mxu0 0.0
    %308 = vmatpush1.msra.mxu0 0.0
    %309 = vmatprep.subr.mxu0 0.0
    %310 = vmatpush1.msra.mxu0 0.0
    %311 = vmatprep.subr.mxu0 0.0
    %312 = vmatpush1.msra.mxu0 0.0
    %313 = vmatprep.subr.mxu0 0.0
    %314 = vmatpush1.msra.mxu0 0.0
    %315 = vmatprep.subr.mxu0 0.0
    %316 = vmatpush1.msra.mxu0 0.0
    %317 = vmatprep.mubr.f32.mxu0 0.0
    %318 = vmatmul.mubr.f32.gmra.mrb[0].mxu0 %v248
    %v319 = vpop.f32.mrb[0].mxu0
    %v320 = vadd.f32 %v239, %v319
    %v321 = vpop.f32.mrb[0].mxu0
    %v322 = vadd.f32 %v243, %v321
    %323 = vmatprep.mubr.f32.mxu0 0.0
    %324 = vmatmul.mubr.f32.gmra.mrb[0].mxu0 %v251
    %v325 = vpop.f32.mrb[0].mxu0
    %v326 = vadd.f32 %v239, %v325
    %v327 = vpop.f32.mrb[0].mxu0
    %v328 = vadd.f32 %v243, %v327
    %329 = vdwg.mxu0
    %330 = vst [vmem:[#allocation9] sm:$0xff] %v320
    %331 = vst [vmem:[#allocation9 + $0x8] sm:$0xff] %v322
    %332 = vst [vmem:[#allocation9 + $0x10] sm:$0xff] %v326
    %333 = vst [vmem:[#allocation9 + $0x18] sm:$0xff] %v328
    // Predicated region
    $region46: #{tpu_custom_call.1} parent=1 // pred_check
      _
    $region47: #{tpu_custom_call.1} parent=1 // pred_check_branch
      %335 = sbr.rel (0) target = $region49
    $region48: #{tpu_custom_call.1} parent=1 // pred_region
      %s337 = ssub.s32 512, 512
      %338 = vsyncadd [#allocation5], %s337
      %s339 = sshll.u32 [#allocation9], 4
      %s340 = int_to_ptr.vmem [resolvable:$true] %s339
      %345 = dma.vmem_to_hbm [thread:$0]  %s340, 512, %s7, [#allocation5], 256, 256, 16
    $region49: #{tpu_custom_call.1} parent=1 // pred_fallthru
      _
    // Predicated region
    $region50: #{tpu_custom_call.1} parent=1 // pred_check
      _
    $region51: #{tpu_custom_call.1} parent=1 // pred_check_branch
      %347 = sbr.rel (0) target = $region53
    $region52: #{tpu_custom_call.1} parent=1 // pred_region
      %348 = dma.done [#allocation5], 512
    $region53: #{tpu_custom_call.1} parent=1 // pred_fallthru
      _
    %349 = vsyncpa [#allocation4], 1
    %350 = vsyncpa [#allocation7], 1
    %351 = vsyncpa [#allocation5], 1

</llo_original>
